<compile_context>
chip_gen: v7x
topology: tpu7x:2x2x1
jax: 0.10.0
libtpu: 0.0.40
codegen_flags: <defaults>
</compile_context>

<pallas_src>
import functools

import jax
import jax.numpy as jnp
from jax import lax
from jax.experimental import pallas as pl
from jax.experimental.pallas import tpu as pltpu


def _agcn_kernel(xt_ref, polys_ref, w_id_ref, w_hi_ref, b_ref, o_ref,
                 *, num_poly_terms: int):
    """One grid step = one node tile of TB lane-packed batch elements.

    Grid is (node_tiles, batch_tiles); program_id(0) = node-tile index.

    xt_ref:    (1, N, TB*C_in)            batch-packed activations (full node range)
    polys_ref: (P, tn, N)                 node-tile rows of Chebyshev terms T_1..T_{K-1}
    w_id_ref:  (TB*C_in, TB*C_out)        kron(I_TB, sum_s W_{s,0})   [Buffered(1)]
    w_hi_ref:  (P, TB*C_in, TB*C_out)     kron(I_TB, W_{s,k}) per term [Buffered(1)]
    b_ref:     (1, TB*C_out)              batch-tiled bias, fp32       [Buffered(1)]
    o_ref:     (1, tn, TB*C_out)
    """
    tn = o_ref.shape[1]
    row0 = pl.multiple_of(pl.program_id(0) * tn, tn)

    xt = xt_ref[0]                                   # (N, TB*C_in) propagation operand
    xt_rows = xt_ref[0, pl.ds(row0, tn), :]          # (tn, TB*C_in) rows of this tile

    # T_0 (identity) terms of all supports folded into one projection:
    # no graph matmul at all for them.
    acc = jnp.dot(xt_rows, w_id_ref[...], preferred_element_type=jnp.float32)

    # Remaining Chebyshev terms: lane-dense graph propagation on the node tile
    # followed by a block-diagonal projection, accumulated in fp32 on the MXU.
    def term(i, acc):
        z = jnp.dot(polys_ref[i], xt, preferred_element_type=jnp.float32)
        return acc + jnp.dot(z.astype(xt.dtype), w_hi_ref[i],
                             preferred_element_type=jnp.float32)

    # Small P: fully unrolled (LLO visibility).  Large P: rolled loop carrying
    # acc so the live ranges stay bounded (no vreg-spill chain).
    acc = lax.fori_loop(0, num_poly_terms, term, acc,
                        unroll=(num_poly_terms <= 8))

    o_ref[0] = (acc + b_ref[...]).astype(o_ref.dtype)


def _blockdiag(w, tb):
    """(C_in, C_out) -> kron(I_tb, w) of shape (tb*C_in, tb*C_out)."""
    c_in, c_out = w.shape
    eye = jnp.eye(tb, dtype=w.dtype)
    blk = eye[:, None, :, None] * w[None, :, None, :]           # (tb,C_in,tb,C_out)
    return blk.reshape(tb * c_in, tb * c_out)


def _default_batch_tile(B, C_in, C_out, lane_cap=256):
    """Pick tb | B targeting 128-lane-aligned packed dims, capped at lane_cap.

    The cap (tb*max(C_in,C_out) <= 256) contains the kron(I_tb, W) waste: the
    block-diagonal projection costs tb x extra FLOPs and tb^2 x weight bytes,
    which must stay minor vs the O(N^2) propagation.
    """
    cmax = max(C_in, C_out)
    divisors = [d for d in range(1, B + 1) if B % d == 0]
    # Smallest packing with a full multiple-of-128 output lane width
    # (unmasked vst on the store path) inside the cap.
    aligned = [d for d in divisors if (d * C_out) % 128 == 0 and d * cmax <= lane_cap]
    if aligned:
        return aligned[0]
    # Otherwise: as lane-dense as the cap allows (handles odd / prime B too).
    under = [d for d in divisors if d * cmax <= lane_cap]
    return under[-1] if under else 1


def _default_node_tile(N, target=256):
    """Largest divisor of N that is a multiple of 8 and <= target (or N itself)."""
    if N <= target:
        return N
    best = None
    for t in range(8, target + 1, 8):
        if N % t == 0:
            best = t
    return best if best is not None else N


def agcn_forward(x, supports, weights, bias, cheb_k, *,
                 batch_tile=None, node_tile=None, compute_dtype=jnp.bfloat16):
    """x: (B, N, C_in); supports: (S, N, N); weights: (S*cheb_k*C_in, C_out);
    bias: (C_out,).  Returns (B, N, C_out).

    MXU operands (Chebyshev stack, activations, weights) are cast to
    `compute_dtype` (default bf16, fp32 accumulation); set compute_dtype=f32
    for bit-tighter results at 2x the VMEM/DMA cost.
    """
    B, N, C_in = x.shape
    S = supports.shape[0]
    C_out = weights.shape[1]
    if cheb_k < 2:
        # The module always emits [I, A] per support; cheb_k < 2 would also
        # mismatch the weight shape.  Guard instead of silently corrupting.
        raise ValueError("agcn_forward requires cheb_k >= 2")
    assert weights.shape[0] == S * cheb_k * C_in

    f32 = jnp.float32
    compute_dtype = jnp.dtype(compute_dtype)

    tb = batch_tile if batch_tile is not None else _default_batch_tile(B, C_in, C_out)
    assert B % tb == 0, "batch_tile must divide the batch size"
    G = B // tb

    tn = node_tile if node_tile is not None else _default_node_tile(N)
    assert N % tn == 0, "node_tile must divide the number of nodes"
    assert tn % 8 == 0 or tn == N, "node_tile must be a multiple of 8 (sublane)"
    NT = N // tn

    P = S * (cheb_k - 1)

    # ---------- one-time wrapper-side prep (plain XLA, tiny vs. the kernel) ----------
    # Chebyshev stack WITHOUT the identity term: [A_s, T_2,s, ..., T_{K-1},s].
    # Recursion in fp32; storage dtype = compute_dtype (bf16 halves VMEM/DMA).
    poly_list = []
    for s in range(S):
        a = supports[s].astype(f32)
        t_prev = jnp.eye(N, dtype=f32)
        t_cur = a
        terms = [t_cur]
        for _ in range(2, cheb_k):
            t_next = 2.0 * (a @ t_cur) - t_prev
            terms.append(t_next)
            t_prev, t_cur = t_cur, t_next
        poly_list.extend(terms)
    polys = jnp.stack(poly_list, axis=0).astype(compute_dtype)          # (P, N, N)

    # Per-term weights; the S identity-term slices collapse into one matrix.
    w4 = weights.astype(f32).reshape(S, cheb_k, C_in, C_out)
    w_id = jnp.sum(w4[:, 0], axis=0)                                    # (C_in, C_out)
    w_hi = w4[:, 1:].reshape(P, C_in, C_out)                            # matches `polys`

    # Block-diagonal expansion so the projection of the batch-packed
    # (tn, tb*C_in) activations is a single lane-dense matmul per term.
    w_id_blk = _blockdiag(w_id, tb).astype(compute_dtype)               # (tb*C_in, tb*C_out)
    w_hi_blk = jnp.stack([_blockdiag(w_hi[i], tb) for i in range(P)],
                         axis=0).astype(compute_dtype)                  # (P, tb*C_in, tb*C_out)
    bias_blk = jnp.tile(bias.astype(f32).reshape(1, C_out), (1, tb))    # (1, tb*C_out)

    # Batch-packed activations: lanes hold tb batch elements x C_in channels.
    xt = (x.reshape(G, tb, N, C_in)
           .transpose(0, 2, 1, 3)
           .reshape(G, N, tb * C_in)
           .astype(compute_dtype))

    # ---------- explicit VMEM budget (invariants single-buffered) ----------
    cb = compute_dtype.itemsize
    ob = jnp.dtype(x.dtype).itemsize
    footprint = (2 * N * tb * C_in * cb                       # xt       (x2 buffers)
                 + 2 * P * tn * N * cb                        # polys    (x2 buffers)
                 + (tb * C_in) * (tb * C_out) * cb            # w_id     (Buffered(1))
                 + P * (tb * C_in) * (tb * C_out) * cb        # w_hi     (Buffered(1))
                 + tb * C_out * 4                             # bias     (Buffered(1))
                 + 2 * tn * tb * C_out * ob)                  # out      (x2 buffers)
    # Headroom for accumulators / internal scratch; floor well above the v5e
    # 16 MiB default scoped limit, ceiling below v5e/v6e physical VMEM.
    vmem_limit = int(min(max(footprint + footprint // 4 + (2 << 20), 32 << 20),
                         100 << 20))

    kernel = functools.partial(_agcn_kernel, num_poly_terms=P)

    out_lane = pl.pallas_call(
        kernel,
        out_shape=jax.ShapeDtypeStruct((G, N, tb * C_out), x.dtype),
        # Node tiles OUTER, batch tiles INNER: each Chebyshev row-slab crosses
        # HBM->VMEM exactly once; the (small) activations are the re-fetched side.
        grid=(NT, G),
        in_specs=[
            pl.BlockSpec((1, N, tb * C_in), lambda n, g: (g, 0, 0)),       # x (full node range)
            pl.BlockSpec((P, tn, N), lambda n, g: (0, n, 0)),              # Chebyshev node tile
            pl.BlockSpec((tb * C_in, tb * C_out), lambda n, g: (0, 0),
                         pipeline_mode=pl.Buffered(1)),                    # identity-term W
            pl.BlockSpec((P, tb * C_in, tb * C_out), lambda n, g: (0, 0, 0),
                         pipeline_mode=pl.Buffered(1)),                    # per-term W
            pl.BlockSpec((1, tb * C_out), lambda n, g: (0, 0),
                         pipeline_mode=pl.Buffered(1)),                    # bias
        ],
        out_specs=pl.BlockSpec((1, tn, tb * C_out), lambda n, g: (g, n, 0)),
        compiler_params=pltpu.CompilerParams(
            # Polynomials/weights are precomputed inputs, blocks never overlap:
            # both grid axes are fully independent -> megacore-shardable.
            dimension_semantics=("parallel", "parallel"),
            vmem_limit_bytes=vmem_limit,
        ),
    )(xt, polys, w_id_blk, w_hi_blk, bias_blk)

    # (G, N, tb*C_out) -> (B, N, C_out)
    return (out_lane.reshape(G, N, tb, C_out)
                    .transpose(0, 2, 1, 3)
                    .reshape(B, N, C_out))


def agcn_reference(x, supports, weights, bias, cheb_k):
    """Pure-JAX reference mirroring the PyTorch AGCN.forward."""
    N = supports.shape[-1]
    support_set = []
    for s in range(supports.shape[0]):
        a = supports[s]
        ks = [jnp.eye(N, dtype=a.dtype), a]
        for _ in range(2, cheb_k):
            ks.append(2.0 * a @ ks[-1] - ks[-2])
        support_set.extend(ks)
    x_g = jnp.concatenate(
        [jnp.einsum('nm,bmc->bnc', s, x) for s in support_set], axis=-1)
    return jnp.einsum('bni,io->bno', x_g, weights) + bias


if __name__ == "__main__":
    # Small shapes consistent with the module: AGCN(d_model, d_model, cheb_k)
    # applied to (batch*seq, num_nodes, d_model), two supports.
    N, C_in, C_out, cheb_k, S = 16, 8, 8, 3, 2

    key = jax.random.PRNGKey(0)
    kx1, kx2, ks, kw, kb = jax.random.split(key, 5)

    # Two row-normalized random adjacency matrices (deterministic).
    raw = jax.random.uniform(ks, (S, N, N), dtype=jnp.float32)
    supports = raw / jnp.sum(raw, axis=-1, keepdims=True)

    # Xavier-normal weights; small random bias to exercise the bias path.
    fan_in, fan_out = S * cheb_k * C_in, C_out
    std = (2.0 / (fan_in + fan_out)) ** 0.5
    weights = std * jax.random.normal(kw, (fan_in, fan_out), dtype=jnp.float32)
    bias = 0.1 * jax.random.normal(kb, (C_out,), dtype=jnp.float32)

    # --- case 1: module-scale batch, single grid step, fp32 operands (tight) ---
    B1 = 2
    x1 = jax.random.normal(kx1, (B1, N, C_in), dtype=jnp.float32)
    out1 = jax.block_until_ready(
        agcn_forward(x1, supports, weights, bias, cheb_k,
                     compute_dtype=jnp.float32))
    ref1 = agcn_reference(x1, supports, weights, bias, cheb_k)
    assert out1.shape == (B1, N, C_out)
    assert jnp.allclose(out1, ref1, atol=1e-3, rtol=1e-3), "fp32 mismatch (grid=1x1)"

    # --- case 2: multi-step grid over batch AND node tiles (fp32) ---
    B2 = 8
    x2 = jax.random.normal(kx2, (B2, N, C_in), dtype=jnp.float32)
    out2 = jax.block_until_ready(
        agcn_forward(x2, supports, weights, bias, cheb_k,
                     batch_tile=4, node_tile=8, compute_dtype=jnp.float32))
    ref2 = agcn_reference(x2, supports, weights, bias, cheb_k)
    assert out2.shape == (B2, N, C_out)
    assert jnp.allclose(out2, ref2, atol=1e-3, rtol=1e-3), "fp32 mismatch (grid=2x2)"

    # --- case 3: defaults (bf16 MXU operands, fp32 accumulation, auto tiles) ---
    out3 = jax.block_until_ready(agcn_forward(x2, supports, weights, bias, cheb_k))
    assert jnp.allclose(out3, ref2, atol=5e-2, rtol=5e-2), "bf16 mismatch"

    print("KERNEL_OK")
</pallas_src>

<mosaic_0001>
module attributes {stable_mosaic.version = 11 : i64} {
  func.func @_agcn_kernel(%arg0: i32, %arg1: i32, %arg2: memref<1x16x16xf32, #tpu.memory_space<vmem>>, %arg3: memref<4x16x16xf32, #tpu.memory_space<vmem>>, %arg4: memref<16x16xf32, #tpu.memory_space<vmem>>, %arg5: memref<4x16x16xf32, #tpu.memory_space<vmem>>, %arg6: memref<1x16xf32, #tpu.memory_space<vmem>>, %arg7: memref<1x16x16xf32, #tpu.memory_space<vmem>>) attributes {dimension_semantics = [#tpu.dimension_semantics<parallel>, #tpu.dimension_semantics<parallel>], iteration_bounds = array<i64: 1, 1>, scalar_prefetch = 0 : i64, scratch_operands = 0 : i64, tpu.core_type = #tpu.core_type<tc>, window_params = [{transform_indices = @transform_0, window_bounds = array<i64: 1, 16, 16>}, {transform_indices = @transform_1, window_bounds = array<i64: 4, 16, 16>}, {pipeline_mode = #tpu.pipeline_mode<synchronous>, transform_indices = @transform_2, window_bounds = array<i64: 16, 16>}, {pipeline_mode = #tpu.pipeline_mode<synchronous>, transform_indices = @transform_3, window_bounds = array<i64: 4, 16, 16>}, {pipeline_mode = #tpu.pipeline_mode<synchronous>, transform_indices = @transform_4, window_bounds = array<i64: 1, 16>}, {transform_indices = @transform_5, window_bounds = array<i64: 1, 16, 16>}]} {
    %c16_i32 = arith.constant 16 : i32
    %0 = arith.muli %arg0, %c16_i32 : i32
    %1 = tpu.assume_multiple %0, 16 : i32
    %c0 = arith.constant 0 : index
    %c0_0 = arith.constant 0 : index
    %c0_1 = arith.constant 0 : index
    %2 = vector.load %arg2[%c0, %c0_0, %c0_1] : memref<1x16x16xf32, #tpu.memory_space<vmem>>, vector<1x16x16xf32>
    %3 = vector.shape_cast %2 : vector<1x16x16xf32> to vector<16x16xf32>
    %c0_2 = arith.constant 0 : index
    %4 = arith.index_cast %1 : i32 to index
    %c0_3 = arith.constant 0 : index
    %5 = vector.load %arg2[%c0_2, %4, %c0_3] : memref<1x16x16xf32, #tpu.memory_space<vmem>>, vector<1x16x16xf32>
    %6 = vector.shape_cast %5 : vector<1x16x16xf32> to vector<16x16xf32>
    %c0_4 = arith.constant 0 : index
    %c0_5 = arith.constant 0 : index
    %7 = vector.load %arg4[%c0_4, %c0_5] : memref<16x16xf32, #tpu.memory_space<vmem>>, vector<16x16xf32>
    %cst = arith.constant dense<0.000000e+00> : vector<16x16xf32>
    %8 = tpu.matmul %6, %7, %cst {dimension_numbers = #tpu.dot_dimension_numbers<[1], [0], [0], [1], [0, 0, 1, 1], [], []>} : vector<16x16xf32>, vector<16x16xf32>, vector<16x16xf32> -> vector<16x16xf32>
    %c0_i32 = arith.constant 0 : i32
    %9 = arith.index_cast %c0_i32 : i32 to index
    %c0_6 = arith.constant 0 : index
    %c0_7 = arith.constant 0 : index
    %10 = vector.load %arg3[%9, %c0_6, %c0_7] : memref<4x16x16xf32, #tpu.memory_space<vmem>>, vector<1x16x16xf32>
    %11 = vector.shape_cast %10 : vector<1x16x16xf32> to vector<16x16xf32>
    %cst_8 = arith.constant dense<0.000000e+00> : vector<16x16xf32>
    %12 = tpu.matmul %11, %3, %cst_8 {dimension_numbers = #tpu.dot_dimension_numbers<[1], [0], [0], [1], [0, 0, 1, 1], [], []>} : vector<16x16xf32>, vector<16x16xf32>, vector<16x16xf32> -> vector<16x16xf32>
    %13 = arith.index_cast %c0_i32 : i32 to index
    %c0_9 = arith.constant 0 : index
    %c0_10 = arith.constant 0 : index
    %14 = vector.load %arg5[%13, %c0_9, %c0_10] : memref<4x16x16xf32, #tpu.memory_space<vmem>>, vector<1x16x16xf32>
    %15 = vector.shape_cast %14 : vector<1x16x16xf32> to vector<16x16xf32>
    %cst_11 = arith.constant dense<0.000000e+00> : vector<16x16xf32>
    %16 = tpu.matmul %12, %15, %cst_11 {dimension_numbers = #tpu.dot_dimension_numbers<[1], [0], [0], [1], [0, 0, 1, 1], [], []>} : vector<16x16xf32>, vector<16x16xf32>, vector<16x16xf32> -> vector<16x16xf32>
    %17 = arith.addf %8, %16 : vector<16x16xf32>
    %c1_i32 = arith.constant 1 : i32
    %18 = arith.index_cast %c1_i32 : i32 to index
    %c0_12 = arith.constant 0 : index
    %c0_13 = arith.constant 0 : index
    %19 = vector.load %arg3[%18, %c0_12, %c0_13] : memref<4x16x16xf32, #tpu.memory_space<vmem>>, vector<1x16x16xf32>
    %20 = vector.shape_cast %19 : vector<1x16x16xf32> to vector<16x16xf32>
    %cst_14 = arith.constant dense<0.000000e+00> : vector<16x16xf32>
    %21 = tpu.matmul %20, %3, %cst_14 {dimension_numbers = #tpu.dot_dimension_numbers<[1], [0], [0], [1], [0, 0, 1, 1], [], []>} : vector<16x16xf32>, vector<16x16xf32>, vector<16x16xf32> -> vector<16x16xf32>
    %22 = arith.index_cast %c1_i32 : i32 to index
    %c0_15 = arith.constant 0 : index
    %c0_16 = arith.constant 0 : index
    %23 = vector.load %arg5[%22, %c0_15, %c0_16] : memref<4x16x16xf32, #tpu.memory_space<vmem>>, vector<1x16x16xf32>
    %24 = vector.shape_cast %23 : vector<1x16x16xf32> to vector<16x16xf32>
    %cst_17 = arith.constant dense<0.000000e+00> : vector<16x16xf32>
    %25 = tpu.matmul %21, %24, %cst_17 {dimension_numbers = #tpu.dot_dimension_numbers<[1], [0], [0], [1], [0, 0, 1, 1], [], []>} : vector<16x16xf32>, vector<16x16xf32>, vector<16x16xf32> -> vector<16x16xf32>
    %26 = arith.addf %17, %25 : vector<16x16xf32>
    %c2_i32 = arith.constant 2 : i32
    %27 = arith.index_cast %c2_i32 : i32 to index
    %c0_18 = arith.constant 0 : index
    %c0_19 = arith.constant 0 : index
    %28 = vector.load %arg3[%27, %c0_18, %c0_19] : memref<4x16x16xf32, #tpu.memory_space<vmem>>, vector<1x16x16xf32>
    %29 = vector.shape_cast %28 : vector<1x16x16xf32> to vector<16x16xf32>
    %cst_20 = arith.constant dense<0.000000e+00> : vector<16x16xf32>
    %30 = tpu.matmul %29, %3, %cst_20 {dimension_numbers = #tpu.dot_dimension_numbers<[1], [0], [0], [1], [0, 0, 1, 1], [], []>} : vector<16x16xf32>, vector<16x16xf32>, vector<16x16xf32> -> vector<16x16xf32>
    %31 = arith.index_cast %c2_i32 : i32 to index
    %c0_21 = arith.constant 0 : index
    %c0_22 = arith.constant 0 : index
    %32 = vector.load %arg5[%31, %c0_21, %c0_22] : memref<4x16x16xf32, #tpu.memory_space<vmem>>, vector<1x16x16xf32>
    %33 = vector.shape_cast %32 : vector<1x16x16xf32> to vector<16x16xf32>
    %cst_23 = arith.constant dense<0.000000e+00> : vector<16x16xf32>
    %34 = tpu.matmul %30, %33, %cst_23 {dimension_numbers = #tpu.dot_dimension_numbers<[1], [0], [0], [1], [0, 0, 1, 1], [], []>} : vector<16x16xf32>, vector<16x16xf32>, vector<16x16xf32> -> vector<16x16xf32>
    %35 = arith.addf %26, %34 : vector<16x16xf32>
    %c3_i32 = arith.constant 3 : i32
    %36 = arith.index_cast %c3_i32 : i32 to index
    %c0_24 = arith.constant 0 : index
    %c0_25 = arith.constant 0 : index
    %37 = vector.load %arg3[%36, %c0_24, %c0_25] : memref<4x16x16xf32, #tpu.memory_space<vmem>>, vector<1x16x16xf32>
    %38 = vector.shape_cast %37 : vector<1x16x16xf32> to vector<16x16xf32>
    %cst_26 = arith.constant dense<0.000000e+00> : vector<16x16xf32>
    %39 = tpu.matmul %38, %3, %cst_26 {dimension_numbers = #tpu.dot_dimension_numbers<[1], [0], [0], [1], [0, 0, 1, 1], [], []>} : vector<16x16xf32>, vector<16x16xf32>, vector<16x16xf32> -> vector<16x16xf32>
    %40 = arith.index_cast %c3_i32 : i32 to index
    %c0_27 = arith.constant 0 : index
    %c0_28 = arith.constant 0 : index
    %41 = vector.load %arg5[%40, %c0_27, %c0_28] : memref<4x16x16xf32, #tpu.memory_space<vmem>>, vector<1x16x16xf32>
    %42 = vector.shape_cast %41 : vector<1x16x16xf32> to vector<16x16xf32>
    %cst_29 = arith.constant dense<0.000000e+00> : vector<16x16xf32>
    %43 = tpu.matmul %39, %42, %cst_29 {dimension_numbers = #tpu.dot_dimension_numbers<[1], [0], [0], [1], [0, 0, 1, 1], [], []>} : vector<16x16xf32>, vector<16x16xf32>, vector<16x16xf32> -> vector<16x16xf32>
    %44 = arith.addf %35, %43 : vector<16x16xf32>
    %c4_i32 = arith.constant 4 : i32
    %c0_30 = arith.constant 0 : index
    %c0_31 = arith.constant 0 : index
    %45 = vector.load %arg6[%c0_30, %c0_31] : memref<1x16xf32, #tpu.memory_space<vmem>>, vector<1x16xf32>
    %46 = vector.broadcast %45 : vector<1x16xf32> to vector<16x16xf32>
    %47 = arith.addf %44, %46 : vector<16x16xf32>
    %c0_32 = arith.constant 0 : index
    %c0_33 = arith.constant 0 : index
    %c0_34 = arith.constant 0 : index
    %48 = vector.load %arg7[%c0_32, %c0_33, %c0_34] : memref<1x16x16xf32, #tpu.memory_space<vmem>>, vector<1x16x16xf32>
    %49 = vector.shape_cast %48 : vector<1x16x16xf32> to vector<16x16xf32>
    %50 = vector.shape_cast %47 : vector<16x16xf32> to vector<1x16x16xf32>
    tpu.vector_store %arg7[%c0_32, %c0_33, %c0_34], %50 {strides = array<i32>} : memref<1x16x16xf32, #tpu.memory_space<vmem>>, vector<1x16x16xf32>,
    return
  }
  func.func @transform_0(%arg0: i32, %arg1: i32) -> (i32, i32, i32) {
    %c0_i32 = arith.constant 0 : i32
    %c0_i32_0 = arith.constant 0 : i32
    %c0_i32_1 = arith.constant 0 : i32
    return %arg1, %c0_i32, %c0_i32_0 : i32, i32, i32
  }
  func.func @transform_1(%arg0: i32, %arg1: i32) -> (i32, i32, i32) {
    %c0_i32 = arith.constant 0 : i32
    %c0_i32_0 = arith.constant 0 : i32
    %c0_i32_1 = arith.constant 0 : i32
    return %c0_i32, %arg0, %c0_i32_0 : i32, i32, i32
  }
  func.func @transform_2(%arg0: i32, %arg1: i32) -> (i32, i32) {
    %c0_i32 = arith.constant 0 : i32
    %c0_i32_0 = arith.constant 0 : i32
    %c0_i32_1 = arith.constant 0 : i32
    return %c0_i32, %c0_i32_0 : i32, i32
  }
  func.func @transform_3(%arg0: i32, %arg1: i32) -> (i32, i32, i32) {
    %c0_i32 = arith.constant 0 : i32
    %c0_i32_0 = arith.constant 0 : i32
    %c0_i32_1 = arith.constant 0 : i32
    %c0_i32_2 = arith.constant 0 : i32
    return %c0_i32, %c0_i32_0, %c0_i32_1 : i32, i32, i32
  }
  func.func @transform_4(%arg0: i32, %arg1: i32) -> (i32, i32) {
    %c0_i32 = arith.constant 0 : i32
    %c0_i32_0 = arith.constant 0 : i32
    %c0_i32_1 = arith.constant 0 : i32
    return %c0_i32, %c0_i32_0 : i32, i32
  }
  func.func @transform_5(%arg0: i32, %arg1: i32) -> (i32, i32, i32) {
    %c0_i32 = arith.constant 0 : i32
    %c0_i32_0 = arith.constant 0 : i32
    return %arg1, %arg0, %c0_i32 : i32, i32, i32
  }
}

</mosaic_0001>

<llo_original>
// kernel: tpu_custom_call.1
$region0: #{tpu_custom_call.1}
  #allocation0 [shape = 'u32[]', space=smem, size = 0x4, offset = 0x4, fixed_abs, tag = 'smem constant byte address 0x4 - core index']
  #allocation1 [shape = 'u32[144,128]{1,0:T(1,128)}', space=vmem, size = 0x12000, scoped, tag = 'internal scratch']
  %s0 = inlined_call_operand.hbm [shape: f32[1,16,16], index: 0, kind: input, shape index: {}]
  %s1 = inlined_call_operand.hbm [shape: f32[4,16,16], index: 1, kind: input, shape index: {}]
  %s2 = inlined_call_operand.hbm [shape: f32[16,16], index: 2, kind: input, shape index: {}]
  %s3 = inlined_call_operand.hbm [shape: f32[4,16,16], index: 3, kind: input, shape index: {}]
  %s4 = inlined_call_operand.vmem [shape: f32[1,16], index: 4, kind: input, shape index: {}]
  %s5 = inlined_call_operand.hbm [shape: f32[1,16,16], index: 5, kind: output, shape index: {}]
  %s6 = sld [smem:[#allocation0]]
  $region46: #{tpu_custom_call.1} parent=0
    _
  %s8 = ssub.s32 1, %s6
  %s9 = scalar_select 0, %s8, %s6
  $region1: #{tpu_custom_call.1} parent=0
    #allocation2 [shape = 'u8[8192]{0}', space=vmem, size = 0x2000, scoped, tag = 'input window, operand 0, single buffered']
    #allocation3 [shape = 's32[1]{0}', space=sflag, size = 0x4, scoped, tag = 'scoped memory for tpu_custom_call.1']
    #allocation4 [shape = 's32[1]{0}', space=sflag, size = 0x4, scoped, tag = 'scoped memory for tpu_custom_call.1']
    #allocation5 [shape = 'u8[32768]{0}', space=vmem, size = 0x8000, scoped, tag = 'input window, operand 1, single buffered']
    #allocation6 [shape = 's32[1]{0}', space=sflag, size = 0x4, scoped, tag = 'scoped memory for tpu_custom_call.1']
    #allocation7 [shape = 'u8[8192]{0}', space=vmem, size = 0x2000, scoped, tag = 'input window, operand 2, single buffered']
    #allocation8 [shape = 'u8[32768]{0}', space=vmem, size = 0x8000, scoped, tag = 'input window, operand 3, single buffered']
    #allocation9 [shape = 's32[1]{0}', space=sflag, size = 0x4, scoped, tag = 'scoped memory for tpu_custom_call.1']
    #allocation10 [shape = 'u8[8192]{0}', space=vmem, size = 0x2000, scoped, tag = 'output window, operand 0, single buffered']
    %10 = vsyncpa [#allocation3], 0
    %11 = vsyncpa [#allocation6], 0
    %12 = vsyncpa [#allocation9], 0
    %13 = vsyncpa [#allocation4], 0
    // Predicated region
    $region2: #{tpu_custom_call.1} parent=1 // pred_check
      _
    $region3: #{tpu_custom_call.1} parent=1 // pred_check_branch
      %15 = sbr.rel (0) target = $region5
    $region4: #{tpu_custom_call.1} parent=1 // pred_region
      %s17 = ssub.s32 256, 256
      %18 = vsyncadd [#allocation3], %s17
      %s19 = sshll.u32 [#allocation2], 4
      %s20 = int_to_ptr.vmem [resolvable:$true] %s19
      %25 = dma.hbm_to_vmem [thread:$0]  %s0, 256, %s20, [#allocation3], 128, 128, 8
    $region5: #{tpu_custom_call.1} parent=1 // pred_fallthru
      _
    // Predicated region
    $region6: #{tpu_custom_call.1} parent=1 // pred_check
      _
    $region7: #{tpu_custom_call.1} parent=1 // pred_check_branch
      %27 = sbr.rel (0) target = $region9
    $region8: #{tpu_custom_call.1} parent=1 // pred_region
      %s29 = ssub.s32 1024, 1024
      %30 = vsyncadd [#allocation6], %s29
      %s31 = sshll.u32 [#allocation5], 4
      %s32 = int_to_ptr.vmem [resolvable:$true] %s31
      %37 = dma.hbm_to_vmem [thread:$0]  %s1, 1024, %s32, [#allocation6], 128, 128, 8
    $region9: #{tpu_custom_call.1} parent=1 // pred_fallthru
      _
    // Predicated region
    $region10: #{tpu_custom_call.1} parent=1 // pred_check
      _
    $region11: #{tpu_custom_call.1} parent=1 // pred_check_branch
      %39 = sbr.rel (0) target = $region13
    $region12: #{tpu_custom_call.1} parent=1 // pred_region
      %s41 = ssub.s32 256, 256
      %42 = vsyncadd [#allocation6], %s41
      %s43 = sshll.u32 [#allocation7], 4
      %s44 = int_to_ptr.vmem [resolvable:$true] %s43
      %49 = dma.hbm_to_vmem [thread:$0]  %s2, 256, %s44, [#allocation6], 128, 128, 8
    $region13: #{tpu_custom_call.1} parent=1 // pred_fallthru
      _
    // Predicated region
    $region14: #{tpu_custom_call.1} parent=1 // pred_check
      _
    $region15: #{tpu_custom_call.1} parent=1 // pred_check_branch
      %51 = sbr.rel (0) target = $region17
    $region16: #{tpu_custom_call.1} parent=1 // pred_region
      %s53 = ssub.s32 1024, 1024
      %54 = vsyncadd [#allocation9], %s53
      %s55 = sshll.u32 [#allocation8], 4
      %s56 = int_to_ptr.vmem [resolvable:$true] %s55
      %61 = dma.hbm_to_vmem [thread:$0]  %s3, 1024, %s56, [#allocation9], 128, 128, 8
    $region17: #{tpu_custom_call.1} parent=1 // pred_fallthru
      _
    // Predicated region
    $region18: #{tpu_custom_call.1} parent=1 // pred_check
      _
    $region19: #{tpu_custom_call.1} parent=1 // pred_check_branch
      %63 = sbr.rel (0) target = $region21
    $region20: #{tpu_custom_call.1} parent=1 // pred_region
      _
    $region21: #{tpu_custom_call.1} parent=1 // pred_fallthru
      _
    // Predicated region
    $region22: #{tpu_custom_call.1} parent=1 // pred_check
      _
    $region23: #{tpu_custom_call.1} parent=1 // pred_check_branch
      %65 = sbr.rel (0) target = $region25
    $region24: #{tpu_custom_call.1} parent=1 // pred_region
      %66 = dma.done [#allocation3], 256
    $region25: #{tpu_custom_call.1} parent=1 // pred_fallthru
      _
    // Predicated region
    $region26: #{tpu_custom_call.1} parent=1 // pred_check
      _
    $region27: #{tpu_custom_call.1} parent=1 // pred_check_branch
      %68 = sbr.rel (0) target = $region29
    $region28: #{tpu_custom_call.1} parent=1 // pred_region
      %69 = dma.done [#allocation6], 1024
    $region29: #{tpu_custom_call.1} parent=1 // pred_fallthru
      _
    // Predicated region
    $region30: #{tpu_custom_call.1} parent=1 // pred_check
      _
    $region31: #{tpu_custom_call.1} parent=1 // pred_check_branch
      %71 = sbr.rel (0) target = $region33
    $region32: #{tpu_custom_call.1} parent=1 // pred_region
      %72 = dma.done [#allocation6], 256
    $region33: #{tpu_custom_call.1} parent=1 // pred_fallthru
      _
    // Predicated region
    $region34: #{tpu_custom_call.1} parent=1 // pred_check
      _
    $region35: #{tpu_custom_call.1} parent=1 // pred_check_branch
      %74 = sbr.rel (0) target = $region37
    $region36: #{tpu_custom_call.1} parent=1 // pred_region
      %75 = dma.done [#allocation9], 1024
    $region37: #{tpu_custom_call.1} parent=1 // pred_fallthru
      _
    %s76 = smul.u32 0, 16
    %v77 = vld [vmem:[#allocation2] sm:$0xff]
    %v78 = vld [vmem:[#allocation2 + $0x8] sm:$0xff]
    %s79 = scalar_lea.vmem [#allocation2], %s76
    %v80 = vld [vmem:[%s79] sm:$0xff]
    %v81 = vld [vmem:[%s79 + $0x8] sm:$0xff]
    %v82 = vld [vmem:[#allocation7] sm:$0xff]
    %v83 = vld [vmem:[#allocation7 + $0x8] sm:$0xff]
    %v84 = vld [vmem:[#allocation5] sm:$0xff]
    %v85 = vld [vmem:[#allocation5 + $0x8] sm:$0xff]
    %vm86 = vcmask 130048
    %v88 = vsel %vm86, %v84, 0
    %v91 = vsel %vm86, %v85, 0
    %93 = vmatprep.subr.mxu0 0.0
    %94 = vmatpush1.msra.mxu0 %v77
    %95 = vmatprep.subr.mxu0 0.0
    %96 = vmatpush1.msra.mxu0 %v78
    %97 = vmatprep.subr.mxu0 0.0
    %98 = vmatpush1.msra.mxu0 0.0
    %99 = vmatprep.subr.mxu0 0.0
    %100 = vmatpush1.msra.mxu0 0.0
    %101 = vmatprep.subr.mxu0 0.0
    %102 = vmatpush1.msra.mxu0 0.0
    %103 = vmatprep.subr.mxu0 0.0
    %104 = vmatpush1.msra.mxu0 0.0
    %105 = vmatprep.subr.mxu0 0.0
    %106 = vmatpush1.msra.mxu0 0.0
    %107 = vmatprep.subr.mxu0 0.0
    %108 = vmatpush1.msra.mxu0 0.0
    %109 = vmatprep.subr.mxu0 0.0
    %110 = vmatpush1.msra.mxu0 0.0
    %111 = vmatprep.subr.mxu0 0.0
    %112 = vmatpush1.msra.mxu0 0.0
    %113 = vmatprep.subr.mxu0 0.0
    %114 = vmatpush1.msra.mxu0 0.0
    %115 = vmatprep.subr.mxu0 0.0
    %116 = vmatpush1.msra.mxu0 0.0
    %117 = vmatprep.subr.mxu0 0.0
    %118 = vmatpush1.msra.mxu0 0.0
    %119 = vmatprep.subr.mxu0 0.0
    %120 = vmatpush1.msra.mxu0 0.0
    %121 = vmatprep.subr.mxu0 0.0
    %122 = vmatpush1.msra.mxu0 0.0
    %123 = vmatprep.subr.mxu0 0.0
    %124 = vmatpush1.msra.mxu0 0.0
    %125 = vmatprep.subr.mxu0 0.0
    %126 = vmatpush1.msra.mxu0 0.0
    %127 = vmatprep.subr.mxu0 0.0
    %128 = vmatpush1.msra.mxu0 0.0
    %129 = vmatprep.subr.mxu0 0.0
    %130 = vmatpush1.msra.mxu0 0.0
    %131 = vmatprep.subr.mxu0 0.0
    %132 = vmatpush1.msra.mxu0 0.0
    %133 = vmatprep.subr.mxu0 0.0
    %134 = vmatpush1.msra.mxu0 0.0
    %135 = vmatprep.subr.mxu0 0.0
    %136 = vmatpush1.msra.mxu0 0.0
    %137 = vmatprep.subr.mxu0 0.0
    %138 = vmatpush1.msra.mxu0 0.0
    %139 = vmatprep.subr.mxu0 0.0
    %140 = vmatpush1.msra.mxu0 0.0
    %141 = vmatprep.subr.mxu0 0.0
    %142 = vmatpush1.msra.mxu0 0.0
    %143 = vmatprep.subr.mxu0 0.0
    %144 = vmatpush1.msra.mxu0 0.0
    %145 = vmatprep.subr.mxu0 0.0
    %146 = vmatpush1.msra.mxu0 0.0
    %147 = vmatprep.subr.mxu0 0.0
    %148 = vmatpush1.msra.mxu0 0.0
    %149 = vmatprep.subr.mxu0 0.0
    %150 = vmatpush1.msra.mxu0 0.0
    %151 = vmatprep.subr.mxu0 0.0
    %152 = vmatpush1.msra.mxu0 0.0
    %153 = vmatprep.subr.mxu0 0.0
    %154 = vmatpush1.msra.mxu0 0.0
    %155 = vmatprep.subr.mxu0 0.0
    %156 = vmatpush1.msra.mxu0 0.0
    %157 = vmatprep.mubr.f32.mxu0 0.0
    %158 = vmatmul.mubr.f32.gmra.mrb[0].mxu0 %v88
    %v159 = vpop.f32.mrb[0].mxu0
    %v160 = vadd.f32 0.0, %v159
    %v161 = vpop.f32.mrb[0].mxu0
    %162 = vmatprep.mubr.f32.mxu0 0.0
    %163 = vmatmul.mubr.f32.gmra.mrb[0].mxu0 %v91
    %v164 = vpop.f32.mrb[0].mxu0
    %v165 = vadd.f32 0.0, %v164
    %v166 = vpop.f32.mrb[0].mxu0
    %167 = vdwg.mxu0
    %v168 = vld [vmem:[#allocation8] sm:$0xff]
    %v169 = vld [vmem:[#allocation8 + $0x8] sm:$0xff]
    %v171 = vsel %vm86, %v160, 0
    %v174 = vsel %vm86, %v165, 0
    %176 = vmatprep.subr.mxu0 0.0
    %177 = vmatpush1.msra.mxu0 %v168
    %178 = vmatprep.subr.mxu0 0.0
    %179 = vmatpush1.msra.mxu0 %v169
    %180 = vmatprep.subr.mxu0 0.0
    %181 = vmatpush1.msra.mxu0 0.0
    %182 = vmatprep.subr.mxu0 0.0
    %183 = vmatpush1.msra.mxu0 0.0
    %184 = vmatprep.subr.mxu0 0.0
    %185 = vmatpush1.msra.mxu0 0.0
    %186 = vmatprep.subr.mxu0 0.0
    %187 = vmatpush1.msra.mxu0 0.0
    %188 = vmatprep.subr.mxu0 0.0
    %189 = vmatpush1.msra.mxu0 0.0
    %190 = vmatprep.subr.mxu0 0.0
    %191 = vmatpush1.msra.mxu0 0.0
    %192 = vmatprep.subr.mxu0 0.0
    %193 = vmatpush1.msra.mxu0 0.0
    %194 = vmatprep.subr.mxu0 0.0
    %195 = vmatpush1.msra.mxu0 0.0
    %196 = vmatprep.subr.mxu0 0.0
    %197 = vmatpush1.msra.mxu0 0.0
    %198 = vmatprep.subr.mxu0 0.0
    %199 = vmatpush1.msra.mxu0 0.0
    %200 = vmatprep.subr.mxu0 0.0
    %201 = vmatpush1.msra.mxu0 0.0
    %202 = vmatprep.subr.mxu0 0.0
    %203 = vmatpush1.msra.mxu0 0.0
    %204 = vmatprep.subr.mxu0 0.0
    %205 = vmatpush1.msra.mxu0 0.0
    %206 = vmatprep.subr.mxu0 0.0
    %207 = vmatpush1.msra.mxu0 0.0
    %208 = vmatprep.subr.mxu0 0.0
    %209 = vmatpush1.msra.mxu0 0.0
    %210 = vmatprep.subr.mxu0 0.0
    %211 = vmatpush1.msra.mxu0 0.0
    %212 = vmatprep.subr.mxu0 0.0
    %213 = vmatpush1.msra.mxu0 0.0
    %214 = vmatprep.subr.mxu0 0.0
    %215 = vmatpush1.msra.mxu0 0.0
    %216 = vmatprep.subr.mxu0 0.0
    %217 = vmatpush1.msra.mxu0 0.0
    %218 = vmatprep.subr.mxu0 0.0
    %219 = vmatpush1.msra.mxu0 0.0
    %220 = vmatprep.subr.mxu0 0.0
    %221 = vmatpush1.msra.mxu0 0.0
    %222 = vmatprep.subr.mxu0 0.0
    %223 = vmatpush1.msra.mxu0 0.0
    %224 = vmatprep.subr.mxu0 0.0
    %225 = vmatpush1.msra.mxu0 0.0
    %226 = vmatprep.subr.mxu0 0.0
    %227 = vmatpush1.msra.mxu0 0.0
    %228 = vmatprep.subr.mxu0 0.0
    %229 = vmatpush1.msra.mxu0 0.0
    %230 = vmatprep.subr.mxu0 0.0
    %231 = vmatpush1.msra.mxu0 0.0
    %232 = vmatprep.subr.mxu0 0.0
    %233 = vmatpush1.msra.mxu0 0.0
    %234 = vmatprep.subr.mxu0 0.0
    %235 = vmatpush1.msra.mxu0 0.0
    %236 = vmatprep.subr.mxu0 0.0
    %237 = vmatpush1.msra.mxu0 0.0
    %238 = vmatprep.subr.mxu0 0.0
    %239 = vmatpush1.msra.mxu0 0.0
    %240 = vmatprep.mubr.f32.mxu0 0.0
    %241 = vmatmul.mubr.f32.gmra.mrb[0].mxu0 %v171
    %v242 = vpop.f32.mrb[0].mxu0
    %v243 = vadd.f32 0.0, %v242
    %v244 = vpop.f32.mrb[0].mxu0
    %245 = vmatprep.mubr.f32.mxu0 0.0
    %246 = vmatmul.mubr.f32.gmra.mrb[0].mxu0 %v174
    %v247 = vpop.f32.mrb[0].mxu0
    %v248 = vadd.f32 0.0, %v247
    %v249 = vpop.f32.mrb[0].mxu0
    %250 = vdwg.mxu0
    %v252 = vsel %vm86, %v80, 0
    %v255 = vsel %vm86, %v81, 0
    %257 = vmatprep.subr.mxu0 0.0
    %258 = vmatpush1.msra.mxu0 %v82
    %259 = vmatprep.subr.mxu0 0.0
    %260 = vmatpush1.msra.mxu0 %v83
    %261 = vmatprep.subr.mxu0 0.0
    %262 = vmatpush1.msra.mxu0 0.0
    %263 = vmatprep.subr.mxu0 0.0
    %264 = vmatpush1.msra.mxu0 0.0
    %265 = vmatprep.subr.mxu0 0.0
    %266 = vmatpush1.msra.mxu0 0.0
    %267 = vmatprep.subr.mxu0 0.0
    %268 = vmatpush1.msra.mxu0 0.0
    %269 = vmatprep.subr.mxu0 0.0
    %270 = vmatpush1.msra.mxu0 0.0
    %271 = vmatprep.subr.mxu0 0.0
    %272 = vmatpush1.msra.mxu0 0.0
    %273 = vmatprep.subr.mxu0 0.0
    %274 = vmatpush1.msra.mxu0 0.0
    %275 = vmatprep.subr.mxu0 0.0
    %276 = vmatpush1.msra.mxu0 0.0
    %277 = vmatprep.subr.mxu0 0.0
    %278 = vmatpush1.msra.mxu0 0.0
    %279 = vmatprep.subr.mxu0 0.0
    %280 = vmatpush1.msra.mxu0 0.0
    %281 = vmatprep.subr.mxu0 0.0
    %282 = vmatpush1.msra.mxu0 0.0
    %283 = vmatprep.subr.mxu0 0.0
    %284 = vmatpush1.msra.mxu0 0.0
    %285 = vmatprep.subr.mxu0 0.0
    %286 = vmatpush1.msra.mxu0 0.0
    %287 = vmatprep.subr.mxu0 0.0
    %288 = vmatpush1.msra.mxu0 0.0
    %289 = vmatprep.subr.mxu0 0.0
    %290 = vmatpush1.msra.mxu0 0.0
    %291 = vmatprep.subr.mxu0 0.0
    %292 = vmatpush1.msra.mxu0 0.0
    %293 = vmatprep.subr.mxu0 0.0
    %294 = vmatpush1.msra.mxu0 0.0
    %295 = vmatprep.subr.mxu0 0.0
    %296 = vmatpush1.msra.mxu0 0.0
    %297 = vmatprep.subr.mxu0 0.0
    %298 = vmatpush1.msra.mxu0 0.0
    %299 = vmatprep.subr.mxu0 0.0
    %300 = vmatpush1.msra.mxu0 0.0
    %301 = vmatprep.subr.mxu0 0.0
    %302 = vmatpush1.msra.mxu0 0.0
    %303 = vmatprep.subr.mxu0 0.0
    %304 = vmatpush1.msra.mxu0 0.0
    %305 = vmatprep.subr.mxu0 0.0
    %306 = vmatpush1.msra.mxu0 0.0
    %307 = vmatprep.subr.mxu0 0.0
    %308 = vmatpush1.msra.mxu0 0.0
    %309 = vmatprep.subr.mxu0 0.0
    %310 = vmatpush1.msra.mxu0 0.0
    %311 = vmatprep.subr.mxu0 0.0
    %312 = vmatpush1.msra.mxu0 0.0
    %313 = vmatprep.subr.mxu0 0.0
    %314 = vmatpush1.msra.mxu0 0.0
    %315 = vmatprep.subr.mxu0 0.0
    %316 = vmatpush1.msra.mxu0 0.0
    %317 = vmatprep.subr.mxu0 0.0
    %318 = vmatpush1.msra.mxu0 0.0
    %319 = vmatprep.subr.mxu0 0.0
    %320 = vmatpush1.msra.mxu0 0.0
    %321 = vmatprep.mubr.f32.mxu0 0.0
    %322 = vmatmul.mubr.f32.gmra.mrb[0].mxu0 %v252
    %v323 = vpop.f32.mrb[0].mxu0
    %v324 = vadd.f32 %v243, %v323
    %v325 = vpop.f32.mrb[0].mxu0
    %326 = vmatprep.mubr.f32.mxu0 0.0
    %327 = vmatmul.mubr.f32.gmra.mrb[0].mxu0 %v255
    %v328 = vpop.f32.mrb[0].mxu0
    %v329 = vadd.f32 %v248, %v328
    %v330 = vpop.f32.mrb[0].mxu0
    %331 = vdwg.mxu0
    %s332 = scalar_lea.vmem [#allocation5], 16
    %v333 = vld [vmem:[%s332] sm:$0xff]
    %v334 = vld [vmem:[%s332 + $0x8] sm:$0xff]
    %v336 = vsel %vm86, %v333, 0
    %v339 = vsel %vm86, %v334, 0
    %341 = vmatprep.subr.mxu0 0.0
    %342 = vmatpush1.msra.mxu0 %v77
    %343 = vmatprep.subr.mxu0 0.0
    %344 = vmatpush1.msra.mxu0 %v78
    %345 = vmatprep.subr.mxu0 0.0
    %346 = vmatpush1.msra.mxu0 0.0
    %347 = vmatprep.subr.mxu0 0.0
    %348 = vmatpush1.msra.mxu0 0.0
    %349 = vmatprep.subr.mxu0 0.0
    %350 = vmatpush1.msra.mxu0 0.0
    %351 = vmatprep.subr.mxu0 0.0
    %352 = vmatpush1.msra.mxu0 0.0
    %353 = vmatprep.subr.mxu0 0.0
    %354 = vmatpush1.msra.mxu0 0.0
    %355 = vmatprep.subr.mxu0 0.0
    %356 = vmatpush1.msra.mxu0 0.0
    %357 = vmatprep.subr.mxu0 0.0
    %358 = vmatpush1.msra.mxu0 0.0
    %359 = vmatprep.subr.mxu0 0.0
    %360 = vmatpush1.msra.mxu0 0.0
    %361 = vmatprep.subr.mxu0 0.0
    %362 = vmatpush1.msra.mxu0 0.0
    %363 = vmatprep.subr.mxu0 0.0
    %364 = vmatpush1.msra.mxu0 0.0
    %365 = vmatprep.subr.mxu0 0.0
    %366 = vmatpush1.msra.mxu0 0.0
    %367 = vmatprep.subr.mxu0 0.0
    %368 = vmatpush1.msra.mxu0 0.0
    %369 = vmatprep.subr.mxu0 0.0
    %370 = vmatpush1.msra.mxu0 0.0
    %371 = vmatprep.subr.mxu0 0.0
    %372 = vmatpush1.msra.mxu0 0.0
    %373 = vmatprep.subr.mxu0 0.0
    %374 = vmatpush1.msra.mxu0 0.0
    %375 = vmatprep.subr.mxu0 0.0
    %376 = vmatpush1.msra.mxu0 0.0
    %377 = vmatprep.subr.mxu0 0.0
    %378 = vmatpush1.msra.mxu0 0.0
    %379 = vmatprep.subr.mxu0 0.0
    %380 = vmatpush1.msra.mxu0 0.0
    %381 = vmatprep.subr.mxu0 0.0
    %382 = vmatpush1.msra.mxu0 0.0
    %383 = vmatprep.subr.mxu0 0.0
    %384 = vmatpush1.msra.mxu0 0.0
    %385 = vmatprep.subr.mxu0 0.0
    %386 = vmatpush1.msra.mxu0 0.0
    %387 = vmatprep.subr.mxu0 0.0
    %388 = vmatpush1.msra.mxu0 0.0
    %389 = vmatprep.subr.mxu0 0.0
    %390 = vmatpush1.msra.mxu0 0.0
    %391 = vmatprep.subr.mxu0 0.0
    %392 = vmatpush1.msra.mxu0 0.0
    %393 = vmatprep.subr.mxu0 0.0
    %394 = vmatpush1.msra.mxu0 0.0
    %395 = vmatprep.subr.mxu0 0.0
    %396 = vmatpush1.msra.mxu0 0.0
    %397 = vmatprep.subr.mxu0 0.0
    %398 = vmatpush1.msra.mxu0 0.0
    %399 = vmatprep.subr.mxu0 0.0
    %400 = vmatpush1.msra.mxu0 0.0
    %401 = vmatprep.subr.mxu0 0.0
    %402 = vmatpush1.msra.mxu0 0.0
    %403 = vmatprep.subr.mxu0 0.0
    %404 = vmatpush1.msra.mxu0 0.0
    %405 = vmatprep.mubr.f32.mxu0 0.0
    %406 = vmatmul.mubr.f32.gmra.mrb[0].mxu0 %v336
    %v407 = vpop.f32.mrb[0].mxu0
    %v408 = vadd.f32 0.0, %v407
    %v409 = vpop.f32.mrb[0].mxu0
    %410 = vmatprep.mubr.f32.mxu0 0.0
    %411 = vmatmul.mubr.f32.gmra.mrb[0].mxu0 %v339
    %v412 = vpop.f32.mrb[0].mxu0
    %v413 = vadd.f32 0.0, %v412
    %v414 = vpop.f32.mrb[0].mxu0
    %415 = vdwg.mxu0
    %s416 = scalar_lea.vmem [#allocation8], 16
    %v417 = vld [vmem:[%s416] sm:$0xff]
    %v418 = vld [vmem:[%s416 + $0x8] sm:$0xff]
    %v420 = vsel %vm86, %v408, 0
    %v423 = vsel %vm86, %v413, 0
    %425 = vmatprep.subr.mxu0 0.0
    %426 = vmatpush1.msra.mxu0 %v417
    %427 = vmatprep.subr.mxu0 0.0
    %428 = vmatpush1.msra.mxu0 %v418
    %429 = vmatprep.subr.mxu0 0.0
    %430 = vmatpush1.msra.mxu0 0.0
    %431 = vmatprep.subr.mxu0 0.0
    %432 = vmatpush1.msra.mxu0 0.0
    %433 = vmatprep.subr.mxu0 0.0
    %434 = vmatpush1.msra.mxu0 0.0
    %435 = vmatprep.subr.mxu0 0.0
    %436 = vmatpush1.msra.mxu0 0.0
    %437 = vmatprep.subr.mxu0 0.0
    %438 = vmatpush1.msra.mxu0 0.0
    %439 = vmatprep.subr.mxu0 0.0
    %440 = vmatpush1.msra.mxu0 0.0
    %441 = vmatprep.subr.mxu0 0.0
    %442 = vmatpush1.msra.mxu0 0.0
    %443 = vmatprep.subr.mxu0 0.0
    %444 = vmatpush1.msra.mxu0 0.0
    %445 = vmatprep.subr.mxu0 0.0
    %446 = vmatpush1.msra.mxu0 0.0
    %447 = vmatprep.subr.mxu0 0.0
    %448 = vmatpush1.msra.mxu0 0.0
    %449 = vmatprep.subr.mxu0 0.0
    %450 = vmatpush1.msra.mxu0 0.0
    %451 = vmatprep.subr.mxu0 0.0
    %452 = vmatpush1.msra.mxu0 0.0
    %453 = vmatprep.subr.mxu0 0.0
    %454 = vmatpush1.msra.mxu0 0.0
    %455 = vmatprep.subr.mxu0 0.0
    %456 = vmatpush1.msra.mxu0 0.0
    %457 = vmatprep.subr.mxu0 0.0
    %458 = vmatpush1.msra.mxu0 0.0
    %459 = vmatprep.subr.mxu0 0.0
    %460 = vmatpush1.msra.mxu0 0.0
    %461 = vmatprep.subr.mxu0 0.0
    %462 = vmatpush1.msra.mxu0 0.0
    %463 = vmatprep.subr.mxu0 0.0
    %464 = vmatpush1.msra.mxu0 0.0
    %465 = vmatprep.subr.mxu0 0.0
    %466 = vmatpush1.msra.mxu0 0.0
    %467 = vmatprep.subr.mxu0 0.0
    %468 = vmatpush1.msra.mxu0 0.0
    %469 = vmatprep.subr.mxu0 0.0
    %470 = vmatpush1.msra.mxu0 0.0
    %471 = vmatprep.subr.mxu0 0.0
    %472 = vmatpush1.msra.mxu0 0.0
    %473 = vmatprep.subr.mxu0 0.0
    %474 = vmatpush1.msra.mxu0 0.0
    %475 = vmatprep.subr.mxu0 0.0
    %476 = vmatpush1.msra.mxu0 0.0
    %477 = vmatprep.subr.mxu0 0.0
    %478 = vmatpush1.msra.mxu0 0.0
    %479 = vmatprep.subr.mxu0 0.0
    %480 = vmatpush1.msra.mxu0 0.0
    %481 = vmatprep.subr.mxu0 0.0
    %482 = vmatpush1.msra.mxu0 0.0
    %483 = vmatprep.subr.mxu0 0.0
    %484 = vmatpush1.msra.mxu0 0.0
    %485 = vmatprep.subr.mxu0 0.0
    %486 = vmatpush1.msra.mxu0 0.0
    %487 = vmatprep.subr.mxu0 0.0
    %488 = vmatpush1.msra.mxu0 0.0
    %489 = vmatprep.mubr.f32.mxu0 0.0
    %490 = vmatmul.mubr.f32.gmra.mrb[0].mxu0 %v420
    %v491 = vpop.f32.mrb[0].mxu0
    %v492 = vadd.f32 0.0, %v491
    %v493 = vpop.f32.mrb[0].mxu0
    %494 = vmatprep.mubr.f32.mxu0 0.0
    %495 = vmatmul.mubr.f32.gmra.mrb[0].mxu0 %v423
    %v496 = vpop.f32.mrb[0].mxu0
    %v497 = vadd.f32 0.0, %v496
    %v498 = vpop.f32.mrb[0].mxu0
    %499 = vdwg.mxu0
    %v500 = vadd.f32 %v324, %v492
    %v501 = vadd.f32 %v329, %v497
    %s502 = scalar_lea.vmem [#allocation5], 32
    %v503 = vld [vmem:[%s502] sm:$0xff]
    %v504 = vld [vmem:[%s502 + $0x8] sm:$0xff]
    %v506 = vsel %vm86, %v503, 0
    %v509 = vsel %vm86, %v504, 0
    %511 = vmatprep.subr.mxu0 0.0
    %512 = vmatpush1.msra.mxu0 %v77
    %513 = vmatprep.subr.mxu0 0.0
    %514 = vmatpush1.msra.mxu0 %v78
    %515 = vmatprep.subr.mxu0 0.0
    %516 = vmatpush1.msra.mxu0 0.0
    %517 = vmatprep.subr.mxu0 0.0
    %518 = vmatpush1.msra.mxu0 0.0
    %519 = vmatprep.subr.mxu0 0.0
    %520 = vmatpush1.msra.mxu0 0.0
    %521 = vmatprep.subr.mxu0 0.0
    %522 = vmatpush1.msra.mxu0 0.0
    %523 = vmatprep.subr.mxu0 0.0
    %524 = vmatpush1.msra.mxu0 0.0
    %525 = vmatprep.subr.mxu0 0.0
    %526 = vmatpush1.msra.mxu0 0.0
    %527 = vmatprep.subr.mxu0 0.0
    %528 = vmatpush1.msra.mxu0 0.0
    %529 = vmatprep.subr.mxu0 0.0
    %530 = vmatpush1.msra.mxu0 0.0
    %531 = vmatprep.subr.mxu0 0.0
    %532 = vmatpush1.msra.mxu0 0.0
    %533 = vmatprep.subr.mxu0 0.0
    %534 = vmatpush1.msra.mxu0 0.0
    %535 = vmatprep.subr.mxu0 0.0
    %536 = vmatpush1.msra.mxu0 0.0
    %537 = vmatprep.subr.mxu0 0.0
    %538 = vmatpush1.msra.mxu0 0.0
    %539 = vmatprep.subr.mxu0 0.0
    %540 = vmatpush1.msra.mxu0 0.0
    %541 = vmatprep.subr.mxu0 0.0
    %542 = vmatpush1.msra.mxu0 0.0
    %543 = vmatprep.subr.mxu0 0.0
    %544 = vmatpush1.msra.mxu0 0.0
    %545 = vmatprep.subr.mxu0 0.0
    %546 = vmatpush1.msra.mxu0 0.0
    %547 = vmatprep.subr.mxu0 0.0
    %548 = vmatpush1.msra.mxu0 0.0
    %549 = vmatprep.subr.mxu0 0.0
    %550 = vmatpush1.msra.mxu0 0.0
    %551 = vmatprep.subr.mxu0 0.0
    %552 = vmatpush1.msra.mxu0 0.0
    %553 = vmatprep.subr.mxu0 0.0
    %554 = vmatpush1.msra.mxu0 0.0
    %555 = vmatprep.subr.mxu0 0.0
    %556 = vmatpush1.msra.mxu0 0.0
    %557 = vmatprep.subr.mxu0 0.0
    %558 = vmatpush1.msra.mxu0 0.0
    %559 = vmatprep.subr.mxu0 0.0
    %560 = vmatpush1.msra.mxu0 0.0
    %561 = vmatprep.subr.mxu0 0.0
    %562 = vmatpush1.msra.mxu0 0.0
    %563 = vmatprep.subr.mxu0 0.0
    %564 = vmatpush1.msra.mxu0 0.0
    %565 = vmatprep.subr.mxu0 0.0
    %566 = vmatpush1.msra.mxu0 0.0
    %567 = vmatprep.subr.mxu0 0.0
    %568 = vmatpush1.msra.mxu0 0.0
    %569 = vmatprep.subr.mxu0 0.0
    %570 = vmatpush1.msra.mxu0 0.0
    %571 = vmatprep.subr.mxu0 0.0
    %572 = vmatpush1.msra.mxu0 0.0
    %573 = vmatprep.subr.mxu0 0.0
    %574 = vmatpush1.msra.mxu0 0.0
    %575 = vmatprep.mubr.f32.mxu0 0.0
    %576 = vmatmul.mubr.f32.gmra.mrb[0].mxu0 %v506
    %v577 = vpop.f32.mrb[0].mxu0
    %v578 = vadd.f32 0.0, %v577
    %v579 = vpop.f32.mrb[0].mxu0
    %580 = vmatprep.mubr.f32.mxu0 0.0
    %581 = vmatmul.mubr.f32.gmra.mrb[0].mxu0 %v509
    %v582 = vpop.f32.mrb[0].mxu0
    %v583 = vadd.f32 0.0, %v582
    %v584 = vpop.f32.mrb[0].mxu0
    %585 = vdwg.mxu0
    %s586 = scalar_lea.vmem [#allocation8], 32
    %v587 = vld [vmem:[%s586] sm:$0xff]
    %v588 = vld [vmem:[%s586 + $0x8] sm:$0xff]
    %v590 = vsel %vm86, %v578, 0
    %v593 = vsel %vm86, %v583, 0
    %595 = vmatprep.subr.mxu0 0.0
    %596 = vmatpush1.msra.mxu0 %v587
    %597 = vmatprep.subr.mxu0 0.0
    %598 = vmatpush1.msra.mxu0 %v588
    %599 = vmatprep.subr.mxu0 0.0
    %600 = vmatpush1.msra.mxu0 0.0
    %601 = vmatprep.subr.mxu0 0.0
    %602 = vmatpush1.msra.mxu0 0.0
    %603 = vmatprep.subr.mxu0 0.0
    %604 = vmatpush1.msra.mxu0 0.0
    %605 = vmatprep.subr.mxu0 0.0
    %606 = vmatpush1.msra.mxu0 0.0
    %607 = vmatprep.subr.mxu0 0.0
    %608 = vmatpush1.msra.mxu0 0.0
    %609 = vmatprep.subr.mxu0 0.0
    %610 = vmatpush1.msra.mxu0 0.0
    %611 = vmatprep.subr.mxu0 0.0
    %612 = vmatpush1.msra.mxu0 0.0
    %613 = vmatprep.subr.mxu0 0.0
    %614 = vmatpush1.msra.mxu0 0.0
    %615 = vmatprep.subr.mxu0 0.0
    %616 = vmatpush1.msra.mxu0 0.0
    %617 = vmatprep.subr.mxu0 0.0
    %618 = vmatpush1.msra.mxu0 0.0
    %619 = vmatprep.subr.mxu0 0.0
    %620 = vmatpush1.msra.mxu0 0.0
    %621 = vmatprep.subr.mxu0 0.0
    %622 = vmatpush1.msra.mxu0 0.0
    %623 = vmatprep.subr.mxu0 0.0
    %624 = vmatpush1.msra.mxu0 0.0
    %625 = vmatprep.subr.mxu0 0.0
    %626 = vmatpush1.msra.mxu0 0.0
    %627 = vmatprep.subr.mxu0 0.0
    %628 = vmatpush1.msra.mxu0 0.0
    %629 = vmatprep.subr.mxu0 0.0
    %630 = vmatpush1.msra.mxu0 0.0
    %631 = vmatprep.subr.mxu0 0.0
    %632 = vmatpush1.msra.mxu0 0.0
    %633 = vmatprep.subr.mxu0 0.0
    %634 = vmatpush1.msra.mxu0 0.0
    %635 = vmatprep.subr.mxu0 0.0
    %636 = vmatpush1.msra.mxu0 0.0
    %637 = vmatprep.subr.mxu0 0.0
    %638 = vmatpush1.msra.mxu0 0.0
    %639 = vmatprep.subr.mxu0 0.0
    %640 = vmatpush1.msra.mxu0 0.0
    %641 = vmatprep.subr.mxu0 0.0
    %642 = vmatpush1.msra.mxu0 0.0
    %643 = vmatprep.subr.mxu0 0.0
    %644 = vmatpush1.msra.mxu0 0.0
    %645 = vmatprep.subr.mxu0 0.0
    %646 = vmatpush1.msra.mxu0 0.0
    %647 = vmatprep.subr.mxu0 0.0
    %648 = vmatpush1.msra.mxu0 0.0
    %649 = vmatprep.subr.mxu0 0.0
    %650 = vmatpush1.msra.mxu0 0.0
    %651 = vmatprep.subr.mxu0 0.0
    %652 = vmatpush1.msra.mxu0 0.0
    %653 = vmatprep.subr.mxu0 0.0
    %654 = vmatpush1.msra.mxu0 0.0
    %655 = vmatprep.subr.mxu0 0.0
    %656 = vmatpush1.msra.mxu0 0.0
    %657 = vmatprep.subr.mxu0 0.0
    %658 = vmatpush1.msra.mxu0 0.0
    %659 = vmatprep.mubr.f32.mxu0 0.0
    %660 = vmatmul.mubr.f32.gmra.mrb[0].mxu0 %v590
    %v661 = vpop.f32.mrb[0].mxu0
    %v662 = vadd.f32 0.0, %v661
    %v663 = vpop.f32.mrb[0].mxu0
    %664 = vmatprep.mubr.f32.mxu0 0.0
    %665 = vmatmul.mubr.f32.gmra.mrb[0].mxu0 %v593
    %v666 = vpop.f32.mrb[0].mxu0
    %v667 = vadd.f32 0.0, %v666
    %v668 = vpop.f32.mrb[0].mxu0
    %669 = vdwg.mxu0
    %v670 = vadd.f32 %v500, %v662
    %v671 = vadd.f32 %v501, %v667
    %s672 = scalar_lea.vmem [#allocation5], 48
    %v673 = vld [vmem:[%s672] sm:$0xff]
    %v674 = vld [vmem:[%s672 + $0x8] sm:$0xff]
    %v676 = vsel %vm86, %v673, 0
    %v679 = vsel %vm86, %v674, 0
    %681 = vmatprep.subr.mxu0 0.0
    %682 = vmatpush1.msra.mxu0 %v77
    %683 = vmatprep.subr.mxu0 0.0
    %684 = vmatpush1.msra.mxu0 %v78
    %685 = vmatprep.subr.mxu0 0.0
    %686 = vmatpush1.msra.mxu0 0.0
    %687 = vmatprep.subr.mxu0 0.0
    %688 = vmatpush1.msra.mxu0 0.0
    %689 = vmatprep.subr.mxu0 0.0
    %690 = vmatpush1.msra.mxu0 0.0
    %691 = vmatprep.subr.mxu0 0.0
    %692 = vmatpush1.msra.mxu0 0.0
    %693 = vmatprep.subr.mxu0 0.0
    %694 = vmatpush1.msra.mxu0 0.0
    %695 = vmatprep.subr.mxu0 0.0
    %696 = vmatpush1.msra.mxu0 0.0
    %697 = vmatprep.subr.mxu0 0.0
    %698 = vmatpush1.msra.mxu0 0.0
    %699 = vmatprep.subr.mxu0 0.0
    %700 = vmatpush1.msra.mxu0 0.0
    %701 = vmatprep.subr.mxu0 0.0
    %702 = vmatpush1.msra.mxu0 0.0
    %703 = vmatprep.subr.mxu0 0.0
    %704 = vmatpush1.msra.mxu0 0.0
    %705 = vmatprep.subr.mxu0 0.0
    %706 = vmatpush1.msra.mxu0 0.0
    %707 = vmatprep.subr.mxu0 0.0
    %708 = vmatpush1.msra.mxu0 0.0
    %709 = vmatprep.subr.mxu0 0.0
    %710 = vmatpush1.msra.mxu0 0.0
    %711 = vmatprep.subr.mxu0 0.0
    %712 = vmatpush1.msra.mxu0 0.0
    %713 = vmatprep.subr.mxu0 0.0
    %714 = vmatpush1.msra.mxu0 0.0
    %715 = vmatprep.subr.mxu0 0.0
    %716 = vmatpush1.msra.mxu0 0.0
    %717 = vmatprep.subr.mxu0 0.0
    %718 = vmatpush1.msra.mxu0 0.0
    %719 = vmatprep.subr.mxu0 0.0
    %720 = vmatpush1.msra.mxu0 0.0
    %721 = vmatprep.subr.mxu0 0.0
    %722 = vmatpush1.msra.mxu0 0.0
    %723 = vmatprep.subr.mxu0 0.0
    %724 = vmatpush1.msra.mxu0 0.0
    %725 = vmatprep.subr.mxu0 0.0
    %726 = vmatpush1.msra.mxu0 0.0
    %727 = vmatprep.subr.mxu0 0.0
    %728 = vmatpush1.msra.mxu0 0.0
    %729 = vmatprep.subr.mxu0 0.0
    %730 = vmatpush1.msra.mxu0 0.0
    %731 = vmatprep.subr.mxu0 0.0
    %732 = vmatpush1.msra.mxu0 0.0
    %733 = vmatprep.subr.mxu0 0.0
    %734 = vmatpush1.msra.mxu0 0.0
    %735 = vmatprep.subr.mxu0 0.0
    %736 = vmatpush1.msra.mxu0 0.0
    %737 = vmatprep.subr.mxu0 0.0
    %738 = vmatpush1.msra.mxu0 0.0
    %739 = vmatprep.subr.mxu0 0.0
    %740 = vmatpush1.msra.mxu0 0.0
    %741 = vmatprep.subr.mxu0 0.0
    %742 = vmatpush1.msra.mxu0 0.0
    %743 = vmatprep.subr.mxu0 0.0
    %744 = vmatpush1.msra.mxu0 0.0
    %745 = vmatprep.mubr.f32.mxu0 0.0
    %746 = vmatmul.mubr.f32.gmra.mrb[0].mxu0 %v676
    %v747 = vpop.f32.mrb[0].mxu0
    %v748 = vadd.f32 0.0, %v747
    %v749 = vpop.f32.mrb[0].mxu0
    %750 = vmatprep.mubr.f32.mxu0 0.0
    %751 = vmatmul.mubr.f32.gmra.mrb[0].mxu0 %v679
    %v752 = vpop.f32.mrb[0].mxu0
    %v753 = vadd.f32 0.0, %v752
    %v754 = vpop.f32.mrb[0].mxu0
    %755 = vdwg.mxu0
    %s756 = scalar_lea.vmem [#allocation8], 48
    %v757 = vld [vmem:[%s756] sm:$0xff]
    %v758 = vld [vmem:[%s756 + $0x8] sm:$0xff]
    %v760 = vsel %vm86, %v748, 0
    %v763 = vsel %vm86, %v753, 0
    %765 = vmatprep.subr.mxu0 0.0
    %766 = vmatpush1.msra.mxu0 %v757
    %767 = vmatprep.subr.mxu0 0.0
    %768 = vmatpush1.msra.mxu0 %v758
    %769 = vmatprep.subr.mxu0 0.0
    %770 = vmatpush1.msra.mxu0 0.0
    %771 = vmatprep.subr.mxu0 0.0
    %772 = vmatpush1.msra.mxu0 0.0
    %773 = vmatprep.subr.mxu0 0.0
    %774 = vmatpush1.msra.mxu0 0.0
    %775 = vmatprep.subr.mxu0 0.0
    %776 = vmatpush1.msra.mxu0 0.0
    %777 = vmatprep.subr.mxu0 0.0
    %778 = vmatpush1.msra.mxu0 0.0
    %779 = vmatprep.subr.mxu0 0.0
    %780 = vmatpush1.msra.mxu0 0.0
    %781 = vmatprep.subr.mxu0 0.0
    %782 = vmatpush1.msra.mxu0 0.0
    %783 = vmatprep.subr.mxu0 0.0
    %784 = vmatpush1.msra.mxu0 0.0
    %785 = vmatprep.subr.mxu0 0.0
    %786 = vmatpush1.msra.mxu0 0.0
    %787 = vmatprep.subr.mxu0 0.0
    %788 = vmatpush1.msra.mxu0 0.0
    %789 = vmatprep.subr.mxu0 0.0
    %790 = vmatpush1.msra.mxu0 0.0
    %791 = vmatprep.subr.mxu0 0.0
    %792 = vmatpush1.msra.mxu0 0.0
    %793 = vmatprep.subr.mxu0 0.0
    %794 = vmatpush1.msra.mxu0 0.0
    %795 = vmatprep.subr.mxu0 0.0
    %796 = vmatpush1.msra.mxu0 0.0
    %797 = vmatprep.subr.mxu0 0.0
    %798 = vmatpush1.msra.mxu0 0.0
    %799 = vmatprep.subr.mxu0 0.0
    %800 = vmatpush1.msra.mxu0 0.0
    %801 = vmatprep.subr.mxu0 0.0
    %802 = vmatpush1.msra.mxu0 0.0
    %803 = vmatprep.subr.mxu0 0.0
    %804 = vmatpush1.msra.mxu0 0.0
    %805 = vmatprep.subr.mxu0 0.0
    %806 = vmatpush1.msra.mxu0 0.0
    %807 = vmatprep.subr.mxu0 0.0
    %808 = vmatpush1.msra.mxu0 0.0
    %809 = vmatprep.subr.mxu0 0.0
    %810 = vmatpush1.msra.mxu0 0.0
    %811 = vmatprep.subr.mxu0 0.0
    %812 = vmatpush1.msra.mxu0 0.0
    %813 = vmatprep.subr.mxu0 0.0
    %814 = vmatpush1.msra.mxu0 0.0
    %815 = vmatprep.subr.mxu0 0.0
    %816 = vmatpush1.msra.mxu0 0.0
    %817 = vmatprep.subr.mxu0 0.0
    %818 = vmatpush1.msra.mxu0 0.0
    %819 = vmatprep.subr.mxu0 0.0
    %820 = vmatpush1.msra.mxu0 0.0
    %821 = vmatprep.subr.mxu0 0.0
    %822 = vmatpush1.msra.mxu0 0.0
    %823 = vmatprep.subr.mxu0 0.0
    %824 = vmatpush1.msra.mxu0 0.0
    %825 = vmatprep.subr.mxu0 0.0
    %826 = vmatpush1.msra.mxu0 0.0
    %827 = vmatprep.subr.mxu0 0.0
    %828 = vmatpush1.msra.mxu0 0.0
    %829 = vmatprep.mubr.f32.mxu0 0.0
    %830 = vmatmul.mubr.f32.gmra.mrb[0].mxu0 %v760
    %v831 = vpop.f32.mrb[0].mxu0
    %v832 = vadd.f32 0.0, %v831
    %v833 = vpop.f32.mrb[0].mxu0
    %834 = vmatprep.mubr.f32.mxu0 0.0
    %835 = vmatmul.mubr.f32.gmra.mrb[0].mxu0 %v763
    %v836 = vpop.f32.mrb[0].mxu0
    %v837 = vadd.f32 0.0, %v836
    %v838 = vpop.f32.mrb[0].mxu0
    %839 = vdwg.mxu0
    %v840 = vadd.f32 %v670, %v832
    %v841 = vadd.f32 %v671, %v837
    %v842 = vld [vmem:[%s4] sm:$0x1]
    %v844 = vlaneseq
    %v845 = vshrl.u32 %v844, 7
    %v846 = vsub.s32 0, %v845
    %v847 = vrot.slane %v842, %v846
    %v849 = vadd.f32 %v840, %v847
    %v850 = vadd.f32 %v841, %v847
    %851 = vst.msk [vmem:[#allocation10] sm:$0xff] %vm86, %v849
    %852 = vst.msk [vmem:[#allocation10 + $0x8] sm:$0xff] %vm86, %v850
    // Predicated region
    $region38: #{tpu_custom_call.1} parent=1 // pred_check
      _
    $region39: #{tpu_custom_call.1} parent=1 // pred_check_branch
      %854 = sbr.rel (0) target = $region41
    $region40: #{tpu_custom_call.1} parent=1 // pred_region
      %s856 = ssub.s32 256, 256
      %857 = vsyncadd [#allocation4], %s856
      %s858 = sshll.u32 [#allocation10], 4
      %s859 = int_to_ptr.vmem [resolvable:$true] %s858
      %864 = dma.vmem_to_hbm [thread:$0]  %s859, 256, %s5, [#allocation4], 128, 128, 8
    $region41: #{tpu_custom_call.1} parent=1 // pred_fallthru
      _
    // Predicated region
    $region42: #{tpu_custom_call.1} parent=1 // pred_check
      _
    $region43: #{tpu_custom_call.1} parent=1 // pred_check_branch
      %866 = sbr.rel (0) target = $region45
    $region44: #{tpu_custom_call.1} parent=1 // pred_region
      %867 = dma.done [#allocation4], 256
    $region45: #{tpu_custom_call.1} parent=1 // pred_fallthru
      _
    %868 = vsyncpa [#allocation3], 1
    %869 = vsyncpa [#allocation6], 1
    %870 = vsyncpa [#allocation9], 1
    %871 = vsyncpa [#allocation4], 1

</llo_original>
